<compile_context>
chip_gen: v5e
topology: v5e:2x2
jax: 0.10.0
libtpu: 0.0.40
codegen_flags: <defaults>
</compile_context>

<pallas_src>
import functools

import jax
import jax.numpy as jnp
from jax.experimental import pallas as pl
from jax.experimental.pallas import tpu as pltpu


def _round_up(v, m):
    return (v + m - 1) // m * m


def _apply_nnl(acc, nnl):
    if nnl == 'relu':
        return jnp.maximum(acc, 0.0)
    if nnl == 'sigmoid':
        return jax.nn.sigmoid(acc)
    if nnl == 'gelu':
        return jax.nn.gelu(acc)
    if nnl == 'tanh':
        return jnp.tanh(acc)
    raise NotImplementedError(f'{nnl} not implemented!')


def parse_hidden_size(hidden_size):
    if isinstance(hidden_size, int):
        return [hidden_size]
    if isinstance(hidden_size, str):
        return [int(item) for item in hidden_size.split(',')]
    if isinstance(hidden_size, list):
        return hidden_size
    raise NotImplementedError('hidden_size must be a int, str or list')


def init_mlp_params(key, input_size, hidden_size):
    """Init matching torch.nn.Linear defaults (uniform +-1/sqrt(fan_in)).

    Weights are stored transposed relative to torch (shape (in, out)) so each
    layer computes y = x @ W + b (same math as torch's x @ W_t.T + b).
    """
    sizes = [input_size] + parse_hidden_size(hidden_size)
    assert len(sizes) >= 2, 'Should contain atleast 1 hidden layer'
    params = []
    for i_s, o_s in zip(sizes[:-1], sizes[1:]):
        key, kw, kb = jax.random.split(key, 3)
        bound = 1.0 / jnp.sqrt(jnp.float32(i_s))
        w = jax.random.uniform(kw, (i_s, o_s), jnp.float32, -bound, bound)
        b = jax.random.uniform(kb, (o_s,), jnp.float32, -bound, bound)
        params.append((w, b))
    return params


def _vmem_capacity_bytes():
    try:
        info = pltpu.get_tpu_info()
        cap = getattr(info, 'vmem_capacity_bytes', None)
        if cap:
            return int(cap)
    except Exception:
        pass
    return 64 << 20          # conservative fallback (v7x per-TensorCore VMEM)


def _single_buffer_supported():
    if not hasattr(pl, 'Buffered'):
        return False
    try:
        pl.BlockSpec((8, 128), lambda i, j: (0, 0),
                     pipeline_mode=pl.Buffered(1))
        return True
    except TypeError:
        return False


def _fused_mlp_kernel(*refs, n_layers, compute_dtype, nnl):
    # refs = (x, w0, b0, ..., w_{L-1}, b_{L-1}, out, h_scratch)
    x_ref = refs[0]
    o_ref = refs[1 + 2 * n_layers]
    h_ref = refs[2 + 2 * n_layers]

    # The hidden stack is recomputed only when the label-column tile resets
    # (j == 0); it is cached in VMEM scratch and reused for all column tiles.
    @pl.when(pl.program_id(1) == 0)
    def _():
        h = x_ref[...].astype(compute_dtype)        # in-kernel cast, no host pass
        for li in range(n_layers - 1):
            w = refs[1 + 2 * li][...]               # (K_li, N_li) compute dtype
            b = refs[2 + 2 * li][...]               # (1, N_li)   f32
            a = jnp.dot(h, w, preferred_element_type=jnp.float32) + b   # MXU, f32 acc
            h = _apply_nnl(a, nnl).astype(compute_dtype)
        h_ref[...] = h

    w_last = refs[1 + 2 * (n_layers - 1)][...]      # (K_last, tn) compute dtype
    b_last = refs[2 + 2 * (n_layers - 1)][...]      # (1, tn)      f32
    acc = jnp.dot(h_ref[...], w_last, preferred_element_type=jnp.float32) + b_last
    o_ref[...] = acc.astype(o_ref.dtype)            # no nnl after last layer


def mlp_forward(x, params, nnl='relu', *, compute_dtype=jnp.bfloat16,
                tm=None, tn=None, vmem_budget_bytes=None):
    """Fused MLP forward for 2D (B, D) or 3D (B, S, D) inputs, one pallas_call.

    Matmuls run in `compute_dtype` on the MXU; accumulate / bias / nnl stay f32.
    Note: the f32 path uses the TPU's default dot precision (not forced to
    Precision.HIGHEST).
    """
    orig_shape = x.shape
    x2 = x.reshape(-1, orig_shape[-1])              # free; no cast / pad on host
    M, K0 = x2.shape
    n_layers = len(params)
    dims = [K0] + [w.shape[1] for w, _ in params]
    K_last, N_last = dims[-2], dims[-1]

    out_dtype = x.dtype
    cd_size = jnp.dtype(compute_dtype).itemsize
    x_size = jnp.dtype(x.dtype).itemsize
    out_size = jnp.dtype(out_dtype).itemsize

    # Weights: one-time cast to compute dtype. Biases kept f32, shape (1, N).
    ws = [w.astype(compute_dtype) for w, _ in params]
    bs = [b.astype(jnp.float32).reshape(1, -1) for _, b in params]

    # Generation-aware VMEM budget (128 MiB on v5e/v6e, 64 MiB per TC on v7x).
    cap = _vmem_capacity_bytes()
    if vmem_budget_bytes is None:
        vmem_budget_bytes = (96 << 20) if cap >= (100 << 20) else (36 << 20)
    budget = int(vmem_budget_bytes)
    limit_ceiling = (108 << 20) if cap >= (100 << 20) else (44 << 20)

    single_buffer = _single_buffer_supported()
    res_factor = 1 if single_buffer else 2
    w_res_bytes = sum(dims[i] * dims[i + 1] * cd_size + dims[i + 1] * 4
                      for i in range(n_layers - 1))
    # TODO(synk): if the resident hidden-layer weights alone exceed the budget,
    # add a K-reduction grid axis with a VMEM accumulator instead of full
    # residency (only the final label layer is N-tiled here).

    # ---- column tiling of the final (label) projection ----
    full_last_bytes = K_last * N_last * cd_size + N_last * 4
    if tn is None:
        if res_factor * full_last_bytes <= budget // 3:
            tn = N_last                          # whole last layer stays resident
        else:
            tn = min(2048, _round_up(N_last, 128))
            while tn > 128 and 2 * (K_last * tn * cd_size + tn * 4) > budget // 3:
                tn = max(128, (tn // 2) // 128 * 128)
    n_n_tiles = pl.cdiv(N_last, tn)
    last_factor = 1 if (n_n_tiles == 1 and single_buffer) else 2
    last_tile_bytes = K_last * tn * cd_size + tn * 4

    # ---- batch tiling: biggest tm (multiple of 8) that fits the budget ----
    def vmem_bytes(t):
        return (2 * t * K0 * x_size                     # x tile (double-buffered)
                + 2 * t * tn * out_size                 # out tile (double-buffered)
                + sum(t * d * 4 for d in dims[1:-1])    # f32 hidden intermediates
                + t * K_last * cd_size                  # cached hidden scratch
                + res_factor * w_res_bytes
                + last_factor * last_tile_bytes)

    if M < 8:
        tm = M                                          # full-dim block is legal
    else:
        req = 1024 if tm is None else int(tm)
        tm = max(8, min((req // 8) * 8, (M // 8) * 8))
        while tm > 8 and vmem_bytes(tm) > budget:
            tm = max(8, ((tm // 2) // 8) * 8)
        # Guarantee >= 2 batch tiles so v7x's two TensorCores both get work.
        if M >= 64 and pl.cdiv(M, tm) < 2:
            tm = max(8, _round_up(pl.cdiv(M, 2), 8))
    n_m_tiles = pl.cdiv(M, tm)

    vmem_limit = int(min(limit_ceiling, max(32 << 20, vmem_bytes(tm) + (8 << 20))))

    # ---- advisory cost estimate ----
    flops = 2 * M * sum(dims[i] * dims[i + 1] for i in range(n_layers))
    transcendentals = 0 if nnl == 'relu' else M * sum(dims[1:-1])
    last_reads = n_m_tiles if n_n_tiles > 1 else 1
    bytes_accessed = (M * K0 * x_size + w_res_bytes
                      + last_reads * full_last_bytes + M * N_last * out_size)

    kernel = functools.partial(_fused_mlp_kernel, n_layers=n_layers,
                               compute_dtype=compute_dtype, nnl=nnl)
    operands = [x2]
    for w, b in zip(ws, bs):
        operands += [w, b]

    def _build_specs(use_single_buffer):
        def _resident(shape):
            # Constant index_map -> never re-DMA'd; single-buffer when possible
            # so resident weights only occupy one VMEM copy.
            if use_single_buffer:
                return pl.BlockSpec(shape, lambda i, j: (0, 0),
                                    pipeline_mode=pl.Buffered(1))
            return pl.BlockSpec(shape, lambda i, j: (0, 0))

        in_specs = [pl.BlockSpec((tm, K0), lambda i, j: (i, 0))]
        for li in range(n_layers - 1):
            in_specs.append(_resident((dims[li], dims[li + 1])))
            in_specs.append(_resident((1, dims[li + 1])))
        if n_n_tiles == 1:
            in_specs.append(_resident((K_last, tn)))
            in_specs.append(_resident((1, tn)))
        else:
            in_specs.append(pl.BlockSpec((K_last, tn), lambda i, j: (0, j)))
            in_specs.append(pl.BlockSpec((1, tn), lambda i, j: (0, j)))
        out_spec = pl.BlockSpec((tm, tn), lambda i, j: (i, j))
        return in_specs, out_spec

    def _call(use_single_buffer):
        in_specs, out_spec = _build_specs(use_single_buffer)
        return pl.pallas_call(
            kernel,
            out_shape=jax.ShapeDtypeStruct((M, N_last), out_dtype),
            grid=(n_m_tiles, n_n_tiles),
            in_specs=in_specs,
            out_specs=out_spec,
            scratch_shapes=[pltpu.VMEM((tm, K_last), compute_dtype)],
            compiler_params=pltpu.CompilerParams(
                # batch tiles shard across v7x's 2 TCs; column tiles must run
                # in order (j == 0 fills the hidden-activation scratch).
                dimension_semantics=("parallel", "arbitrary"),
                vmem_limit_bytes=vmem_limit),
            cost_estimate=pl.CostEstimate(flops=flops,
                                          transcendentals=transcendentals,
                                          bytes_accessed=bytes_accessed),
        )(*operands)

    if single_buffer:
        try:
            y = _call(True)
        except Exception:
            # pipeline_mode not honored by this backend/version -> default buffers
            y = _call(False)
    else:
        y = _call(False)

    if len(orig_shape) == 3:
        y = y.reshape(orig_shape[0], orig_shape[1], N_last)
    return y


def _reference_forward(x, params, nnl='relu'):
    # Pure-JAX reference for correctness checks.
    orig_shape = x.shape
    h = x.reshape(-1, orig_shape[-1]).astype(jnp.float32)
    n = len(params)
    for i, (w, b) in enumerate(params):
        h = h @ w + b
        if i < n - 1:
            h = _apply_nnl(h, nnl)
    if len(orig_shape) == 3:
        h = h.reshape(orig_shape[0], orig_shape[1], -1)
    return h


if __name__ == "__main__":
    key = jax.random.PRNGKey(0)
    k_param, k_x2, k_x3 = jax.random.split(key, 3)

    input_size = 32
    hidden_size = "64,48"     # 32 -> 64 -> relu -> 48 (no nnl after last layer)
    params = init_mlp_params(k_param, input_size, hidden_size)

    x2d = jax.random.normal(k_x2, (2, input_size), jnp.float32)       # (B, D)
    x3d = jax.random.normal(k_x3, (2, 8, input_size), jnp.float32)    # (B, S, D)

    ref2d = _reference_forward(x2d, params)
    ref3d = _reference_forward(x3d, params)

    # Default path: bf16 matmul inputs (MXU fast path), f32 accumulate/epilogue.
    y2d = jax.block_until_ready(mlp_forward(x2d, params))
    y3d = jax.block_until_ready(mlp_forward(x3d, params))
    assert y2d.shape == (2, 48)
    assert y3d.shape == (2, 8, 48)
    assert jnp.allclose(y2d, ref2d, atol=3e-2, rtol=3e-2)
    assert jnp.allclose(y3d, ref3d, atol=3e-2, rtol=3e-2)

    # Full-f32 matmul path (tight tolerance).
    y3d_f32 = jax.block_until_ready(
        mlp_forward(x3d, params, compute_dtype=jnp.float32))
    assert jnp.allclose(y3d_f32, ref3d, atol=1e-4, rtol=1e-4)

    # Transcendental non-linearity path.
    y3d_tanh = jax.block_until_ready(
        mlp_forward(x3d, params, nnl='tanh', compute_dtype=jnp.float32))
    assert jnp.allclose(y3d_tanh, _reference_forward(x3d, params, 'tanh'),
                        atol=1e-4, rtol=1e-4)

    print("KERNEL_OK")
</pallas_src>

<mosaic_0001>
module attributes {stable_mosaic.version = 11 : i64} {
  func.func @_fused_mlp_kernel(%arg0: i32, %arg1: i32, %arg2: memref<2x32xf32, #tpu.memory_space<vmem>>, %arg3: memref<32x64xbf16, #tpu.memory_space<vmem>>, %arg4: memref<1x64xf32, #tpu.memory_space<vmem>>, %arg5: memref<64x48xbf16, #tpu.memory_space<vmem>>, %arg6: memref<1x48xf32, #tpu.memory_space<vmem>>, %arg7: memref<2x48xf32, #tpu.memory_space<vmem>>, %arg8: memref<2x64xbf16, #tpu.memory_space<vmem>>) attributes {dimension_semantics = [#tpu.dimension_semantics<parallel>, #tpu.dimension_semantics<arbitrary>], iteration_bounds = array<i64: 1, 1>, scalar_prefetch = 0 : i64, scratch_operands = 1 : i64, tpu.core_type = #tpu.core_type<tc>, window_params = [{transform_indices = @transform_0, window_bounds = array<i64: 2, 32>}, {pipeline_mode = #tpu.pipeline_mode<synchronous>, transform_indices = @transform_1, window_bounds = array<i64: 32, 64>}, {pipeline_mode = #tpu.pipeline_mode<synchronous>, transform_indices = @transform_2, window_bounds = array<i64: 1, 64>}, {pipeline_mode = #tpu.pipeline_mode<synchronous>, transform_indices = @transform_3, window_bounds = array<i64: 64, 48>}, {pipeline_mode = #tpu.pipeline_mode<synchronous>, transform_indices = @transform_4, window_bounds = array<i64: 1, 48>}, {transform_indices = @transform_5, window_bounds = array<i64: 2, 48>}]} {
    %c0_i32 = arith.constant 0 : i32
    %0 = arith.cmpi eq, %arg1, %c0_i32 : i32
    %1 = arith.extui %0 : i1 to i32
    %c0_i32_0 = arith.constant 0 : i32
    %2 = arith.cmpi ne, %1, %c0_i32_0 : i32
    scf.if %2 {
      %c0_8 = arith.constant 0 : index
      %c0_9 = arith.constant 0 : index
      %10 = vector.load %arg2[%c0_8, %c0_9] : memref<2x32xf32, #tpu.memory_space<vmem>>, vector<2x32xf32>
      %11 = arith.truncf %10 : vector<2x32xf32> to vector<2x32xbf16>
      %c0_10 = arith.constant 0 : index
      %c0_11 = arith.constant 0 : index
      %12 = vector.load %arg3[%c0_10, %c0_11] : memref<32x64xbf16, #tpu.memory_space<vmem>>, vector<32x64xbf16>
      %c0_12 = arith.constant 0 : index
      %c0_13 = arith.constant 0 : index
      %13 = vector.load %arg4[%c0_12, %c0_13] : memref<1x64xf32, #tpu.memory_space<vmem>>, vector<1x64xf32>
      %cst_14 = arith.constant dense<0.000000e+00> : vector<2x64xf32>
      %14 = tpu.matmul %11, %12, %cst_14 {dimension_numbers = #tpu.dot_dimension_numbers<[1], [0], [0], [1], [0, 0, 1, 1], [], []>} : vector<2x32xbf16>, vector<32x64xbf16>, vector<2x64xf32> -> vector<2x64xf32>
      %15 = vector.broadcast %13 : vector<1x64xf32> to vector<2x64xf32>
      %16 = arith.addf %14, %15 : vector<2x64xf32>
      %cst_15 = arith.constant 0.000000e+00 : f32
      %17 = vector.broadcast %cst_15 : f32 to vector<2x64xf32>
      %18 = arith.maximumf %16, %17 : vector<2x64xf32>
      %19 = arith.truncf %18 : vector<2x64xf32> to vector<2x64xbf16>
      %c0_16 = arith.constant 0 : index
      %c0_17 = arith.constant 0 : index
      %20 = vector.load %arg8[%c0_16, %c0_17] : memref<2x64xbf16, #tpu.memory_space<vmem>>, vector<2x64xbf16>
      tpu.vector_store %arg8[%c0_16, %c0_17], %19 {strides = array<i32>} : memref<2x64xbf16, #tpu.memory_space<vmem>>, vector<2x64xbf16>,
    } else {
    }
    %c0 = arith.constant 0 : index
    %c0_1 = arith.constant 0 : index
    %3 = vector.load %arg5[%c0, %c0_1] : memref<64x48xbf16, #tpu.memory_space<vmem>>, vector<64x48xbf16>
    %c0_2 = arith.constant 0 : index
    %c0_3 = arith.constant 0 : index
    %4 = vector.load %arg6[%c0_2, %c0_3] : memref<1x48xf32, #tpu.memory_space<vmem>>, vector<1x48xf32>
    %c0_4 = arith.constant 0 : index
    %c0_5 = arith.constant 0 : index
    %5 = vector.load %arg8[%c0_4, %c0_5] : memref<2x64xbf16, #tpu.memory_space<vmem>>, vector<2x64xbf16>
    %cst = arith.constant dense<0.000000e+00> : vector<2x48xf32>
    %6 = tpu.matmul %5, %3, %cst {dimension_numbers = #tpu.dot_dimension_numbers<[1], [0], [0], [1], [0, 0, 1, 1], [], []>} : vector<2x64xbf16>, vector<64x48xbf16>, vector<2x48xf32> -> vector<2x48xf32>
    %7 = vector.broadcast %4 : vector<1x48xf32> to vector<2x48xf32>
    %8 = arith.addf %6, %7 : vector<2x48xf32>
    %c0_6 = arith.constant 0 : index
    %c0_7 = arith.constant 0 : index
    %9 = vector.load %arg7[%c0_6, %c0_7] : memref<2x48xf32, #tpu.memory_space<vmem>>, vector<2x48xf32>
    tpu.vector_store %arg7[%c0_6, %c0_7], %8 {strides = array<i32>} : memref<2x48xf32, #tpu.memory_space<vmem>>, vector<2x48xf32>,
    return
  }
  func.func @transform_0(%arg0: i32, %arg1: i32) -> (i32, i32) {
    %c0_i32 = arith.constant 0 : i32
    %c0_i32_0 = arith.constant 0 : i32
    return %arg0, %c0_i32 : i32, i32
  }
  func.func @transform_1(%arg0: i32, %arg1: i32) -> (i32, i32) {
    %c0_i32 = arith.constant 0 : i32
    %c0_i32_0 = arith.constant 0 : i32
    %c0_i32_1 = arith.constant 0 : i32
    return %c0_i32, %c0_i32_0 : i32, i32
  }
  func.func @transform_2(%arg0: i32, %arg1: i32) -> (i32, i32) {
    %c0_i32 = arith.constant 0 : i32
    %c0_i32_0 = arith.constant 0 : i32
    %c0_i32_1 = arith.constant 0 : i32
    return %c0_i32, %c0_i32_0 : i32, i32
  }
  func.func @transform_3(%arg0: i32, %arg1: i32) -> (i32, i32) {
    %c0_i32 = arith.constant 0 : i32
    %c0_i32_0 = arith.constant 0 : i32
    %c0_i32_1 = arith.constant 0 : i32
    return %c0_i32, %c0_i32_0 : i32, i32
  }
  func.func @transform_4(%arg0: i32, %arg1: i32) -> (i32, i32) {
    %c0_i32 = arith.constant 0 : i32
    %c0_i32_0 = arith.constant 0 : i32
    %c0_i32_1 = arith.constant 0 : i32
    return %c0_i32, %c0_i32_0 : i32, i32
  }
  func.func @transform_5(%arg0: i32, %arg1: i32) -> (i32, i32) {
    %c0_i32 = arith.constant 0 : i32
    return %arg0, %arg1 : i32, i32
  }
}

module attributes {stable_mosaic.version = 11 : i64} {
  func.func @_fused_mlp_kernel(%arg0: i32, %arg1: i32, %arg2: memref<2x32xf32, #tpu.memory_space<vmem>>, %arg3: memref<32x64xbf16, #tpu.memory_space<vmem>>, %arg4: memref<1x64xf32, #tpu.memory_space<vmem>>, %arg5: memref<64x48xbf16, #tpu.memory_space<vmem>>, %arg6: memref<1x48xf32, #tpu.memory_space<vmem>>, %arg7: memref<2x48xf32, #tpu.memory_space<vmem>>, %arg8: memref<2x64xbf16, #tpu.memory_space<vmem>>) attributes {dimension_semantics = [#tpu.dimension_semantics<parallel>, #tpu.dimension_semantics<arbitrary>], iteration_bounds = array<i64: 1, 1>, scalar_prefetch = 0 : i64, scratch_operands = 1 : i64, tpu.core_type = #tpu.core_type<tc>, window_params = [{transform_indices = @transform_0, window_bounds = array<i64: 2, 32>}, {pipeline_mode = #tpu.pipeline_mode<synchronous>, transform_indices = @transform_1, window_bounds = array<i64: 32, 64>}, {pipeline_mode = #tpu.pipeline_mode<synchronous>, transform_indices = @transform_2, window_bounds = array<i64: 1, 64>}, {pipeline_mode = #tpu.pipeline_mode<synchronous>, transform_indices = @transform_3, window_bounds = array<i64: 64, 48>}, {pipeline_mode = #tpu.pipeline_mode<synchronous>, transform_indices = @transform_4, window_bounds = array<i64: 1, 48>}, {transform_indices = @transform_5, window_bounds = array<i64: 2, 48>}]} {
    %c0_i32 = arith.constant 0 : i32
    %0 = arith.cmpi eq, %arg1, %c0_i32 : i32
    %1 = arith.extui %0 : i1 to i32
    %c0_i32_0 = arith.constant 0 : i32
    %2 = arith.cmpi ne, %1, %c0_i32_0 : i32
    scf.if %2 {
      %c0_8 = arith.constant 0 : index
      %c0_9 = arith.constant 0 : index
      %10 = vector.load %arg2[%c0_8, %c0_9] : memref<2x32xf32, #tpu.memory_space<vmem>>, vector<2x32xf32>
      %11 = arith.truncf %10 : vector<2x32xf32> to vector<2x32xbf16>
      %c0_10 = arith.constant 0 : index
      %c0_11 = arith.constant 0 : index
      %12 = vector.load %arg3[%c0_10, %c0_11] : memref<32x64xbf16, #tpu.memory_space<vmem>>, vector<32x64xbf16>
      %c0_12 = arith.constant 0 : index
      %c0_13 = arith.constant 0 : index
      %13 = vector.load %arg4[%c0_12, %c0_13] : memref<1x64xf32, #tpu.memory_space<vmem>>, vector<1x64xf32>
      %cst_14 = arith.constant dense<0.000000e+00> : vector<2x64xf32>
      %14 = tpu.matmul %11, %12, %cst_14 {dimension_numbers = #tpu.dot_dimension_numbers<[1], [0], [0], [1], [0, 0, 1, 1], [], []>} : vector<2x32xbf16>, vector<32x64xbf16>, vector<2x64xf32> -> vector<2x64xf32>
      %15 = vector.broadcast %13 : vector<1x64xf32> to vector<2x64xf32>
      %16 = arith.addf %14, %15 : vector<2x64xf32>
      %cst_15 = arith.constant 0.000000e+00 : f32
      %17 = vector.broadcast %cst_15 : f32 to vector<2x64xf32>
      %18 = arith.maximumf %16, %17 : vector<2x64xf32>
      %19 = arith.truncf %18 : vector<2x64xf32> to vector<2x64xbf16>
      %c0_16 = arith.constant 0 : index
      %c0_17 = arith.constant 0 : index
      %20 = vector.load %arg8[%c0_16, %c0_17] : memref<2x64xbf16, #tpu.memory_space<vmem>>, vector<2x64xbf16>
      tpu.vector_store %arg8[%c0_16, %c0_17], %19 {strides = array<i32>} : memref<2x64xbf16, #tpu.memory_space<vmem>>, vector<2x64xbf16>,
    } else {
    }
    %c0 = arith.constant 0 : index
    %c0_1 = arith.constant 0 : index
    %3 = vector.load %arg5[%c0, %c0_1] : memref<64x48xbf16, #tpu.memory_space<vmem>>, vector<64x48xbf16>
    %c0_2 = arith.constant 0 : index
    %c0_3 = arith.constant 0 : index
    %4 = vector.load %arg6[%c0_2, %c0_3] : memref<1x48xf32, #tpu.memory_space<vmem>>, vector<1x48xf32>
    %c0_4 = arith.constant 0 : index
    %c0_5 = arith.constant 0 : index
    %5 = vector.load %arg8[%c0_4, %c0_5] : memref<2x64xbf16, #tpu.memory_space<vmem>>, vector<2x64xbf16>
    %cst = arith.constant dense<0.000000e+00> : vector<2x48xf32>
    %6 = tpu.matmul %5, %3, %cst {dimension_numbers = #tpu.dot_dimension_numbers<[1], [0], [0], [1], [0, 0, 1, 1], [], []>} : vector<2x64xbf16>, vector<64x48xbf16>, vector<2x48xf32> -> vector<2x48xf32>
    %7 = vector.broadcast %4 : vector<1x48xf32> to vector<2x48xf32>
    %8 = arith.addf %6, %7 : vector<2x48xf32>
    %c0_6 = arith.constant 0 : index
    %c0_7 = arith.constant 0 : index
    %9 = vector.load %arg7[%c0_6, %c0_7] : memref<2x48xf32, #tpu.memory_space<vmem>>, vector<2x48xf32>
    tpu.vector_store %arg7[%c0_6, %c0_7], %8 {strides = array<i32>} : memref<2x48xf32, #tpu.memory_space<vmem>>, vector<2x48xf32>,
    return
  }
  func.func @transform_0(%arg0: i32, %arg1: i32) -> (i32, i32) {
    %c0_i32 = arith.constant 0 : i32
    %c0_i32_0 = arith.constant 0 : i32
    return %arg0, %c0_i32 : i32, i32
  }
  func.func @transform_1(%arg0: i32, %arg1: i32) -> (i32, i32) {
    %c0_i32 = arith.constant 0 : i32
    %c0_i32_0 = arith.constant 0 : i32
    %c0_i32_1 = arith.constant 0 : i32
    return %c0_i32, %c0_i32_0 : i32, i32
  }
  func.func @transform_2(%arg0: i32, %arg1: i32) -> (i32, i32) {
    %c0_i32 = arith.constant 0 : i32
    %c0_i32_0 = arith.constant 0 : i32
    %c0_i32_1 = arith.constant 0 : i32
    return %c0_i32, %c0_i32_0 : i32, i32
  }
  func.func @transform_3(%arg0: i32, %arg1: i32) -> (i32, i32) {
    %c0_i32 = arith.constant 0 : i32
    %c0_i32_0 = arith.constant 0 : i32
    %c0_i32_1 = arith.constant 0 : i32
    return %c0_i32, %c0_i32_0 : i32, i32
  }
  func.func @transform_4(%arg0: i32, %arg1: i32) -> (i32, i32) {
    %c0_i32 = arith.constant 0 : i32
    %c0_i32_0 = arith.constant 0 : i32
    %c0_i32_1 = arith.constant 0 : i32
    return %c0_i32, %c0_i32_0 : i32, i32
  }
  func.func @transform_5(%arg0: i32, %arg1: i32) -> (i32, i32) {
    %c0_i32 = arith.constant 0 : i32
    return %arg0, %arg1 : i32, i32
  }
}

</mosaic_0001>

<llo_original>
// kernel: tpu_custom_call.1
$region0: #{tpu_custom_call.1}
  #allocation0 [shape = 'u32[]', space=smem, size = 0x4, offset = 0x4, fixed_abs, tag = 'smem constant byte address 0x4 - core index']
  #allocation1 [shape = 'u32[72,128]{1,0:T(1,128)}', space=vmem, size = 0x9000, scoped, tag = 'internal scratch']
  #allocation2 [shape = 'bf16[2,64]{1,0:T(2,128)(2,1)}', space=vmem, size = 0x200, scoped, tag = 'scratch operand']
  %s0 = inlined_call_operand.vmem [shape: f32[2,32], index: 0, kind: input, shape index: {}]
  %s1 = inlined_call_operand.vmem [shape: bf16[32,64], index: 1, kind: input, shape index: {}]
  %s2 = inlined_call_operand.vmem [shape: f32[1,64], index: 2, kind: input, shape index: {}]
  %s3 = inlined_call_operand.vmem [shape: bf16[64,48], index: 3, kind: input, shape index: {}]
  %s4 = inlined_call_operand.vmem [shape: f32[1,48], index: 4, kind: input, shape index: {}]
  %s5 = inlined_call_operand.hbm [shape: f32[2,48], index: 5, kind: output, shape index: {}]
  %s6 = sld [smem:[#allocation0]]
  $region34: #{tpu_custom_call.1} parent=0
    _
  %s8 = ssub.s32 1, %s6
  %s9 = scalar_select 0, %s8, %s6
  $region1: #{tpu_custom_call.1} parent=0
    #allocation3 [shape = 'u8[1024]{0}', space=vmem, size = 0x400, scoped, tag = 'output window, operand 0, single buffered']
    #allocation4 [shape = 's32[1]{0}', space=sflag, size = 0x4, scoped, tag = 'scoped memory for tpu_custom_call.1']
    %10 = vsyncpa [#allocation4], 0
    // Predicated region
    $region2: #{tpu_custom_call.1} parent=1 // pred_check
      _
    $region3: #{tpu_custom_call.1} parent=1 // pred_check_branch
      %12 = sbr.rel (0) target = $region5
    $region4: #{tpu_custom_call.1} parent=1 // pred_region
      _
    $region5: #{tpu_custom_call.1} parent=1 // pred_fallthru
      _
    // Predicated region
    $region6: #{tpu_custom_call.1} parent=1 // pred_check
      _
    $region7: #{tpu_custom_call.1} parent=1 // pred_check_branch
      %14 = sbr.rel (0) target = $region9
    $region8: #{tpu_custom_call.1} parent=1 // pred_region
      _
    $region9: #{tpu_custom_call.1} parent=1 // pred_fallthru
      _
    // Predicated region
    $region10: #{tpu_custom_call.1} parent=1 // pred_check
      _
    $region11: #{tpu_custom_call.1} parent=1 // pred_check_branch
      %16 = sbr.rel (0) target = $region13
    $region12: #{tpu_custom_call.1} parent=1 // pred_region
      _
    $region13: #{tpu_custom_call.1} parent=1 // pred_fallthru
      _
    // Predicated region
    $region14: #{tpu_custom_call.1} parent=1 // pred_check
      _
    $region15: #{tpu_custom_call.1} parent=1 // pred_check_branch
      %18 = sbr.rel (0) target = $region17
    $region16: #{tpu_custom_call.1} parent=1 // pred_region
      _
    $region17: #{tpu_custom_call.1} parent=1 // pred_fallthru
      _
    // Predicated region
    $region18: #{tpu_custom_call.1} parent=1 // pred_check
      _
    $region19: #{tpu_custom_call.1} parent=1 // pred_check_branch
      %20 = sbr.rel (0) target = $region21
    $region20: #{tpu_custom_call.1} parent=1 // pred_region
      _
    $region21: #{tpu_custom_call.1} parent=1 // pred_fallthru
      _
    %p22 = scmp.eq.s32.totalorder 0, 0
    // Predicated region
    $region22: #{tpu_custom_call.1} parent=1 // pred_check
      %p23 = pneg %p22
    $region23: #{tpu_custom_call.1} parent=1 // pred_check_branch
      %25 = sbr.rel (%p23) target = $region25
    $region24: #{tpu_custom_call.1} parent=1 // pred_region
      %v26 = vld [vmem:[%s0] sm:$0x3]
      %v27 = vpack.c.bf16 %v26, %v26
      %v28 = vld [vmem:[%s1] sm:$0xf]
      %v29 = vld [vmem:[%s1 + $0x4] sm:$0xf]
      %v30 = vld [vmem:[%s1 + $0x8] sm:$0xf]
      %v31 = vld [vmem:[%s1 + $0xc] sm:$0xf]
      %v32 = vld [vmem:[%s2] sm:$0x1]
      %v34 = vperm.slane %v32, 0
      %v40 = vunpack.c.l.b16 %v28
      %v41 = vunpack.c.l.b16 %v29
      %v42 = vunpack.c.l.b16 %v30
      %v43 = vunpack.c.l.b16 %v31
      %v44 = vpack.c.b16 %v41, %v40
      %v45 = vpack.c.b16 %v43, %v42
      %vm48 = vcmask 261120
      %v50 = vsel %vm48, %v27, 0
      %52 = vmatpush.bf16.msra.mxu0 0
      %53 = vmatpush.bf16.msra.mxu0 0
      %54 = vmatpush.bf16.msra.mxu0 0
      %55 = vmatpush.bf16.msra.mxu0 0
      %56 = vmatpush.bf16.msra.mxu0 0
      %57 = vmatpush.bf16.msra.mxu0 0
      %58 = vmatpush.bf16.msra.mxu0 %v45
      %59 = vmatpush.bf16.msra.mxu0 %v44
      %60 = vmatmul.bf16.gmra.mxu0 %v50
      %v61 = vpop.f32.mrf.mxu0
      %v62 = vadd.f32 %v34, %v61
      %v63 = vpop.f32.mrf.mxu0
      %64 = vdwg.mxu0
      %v65 = vmax.f32 %v62, 0.0
      %v66 = vpack.c.bf16 %v65, %v65
      %vm67 = vcmask 516096
      %68 = vst.msk [vmem:[#allocation2] sm:$0x1] %vm67, %v66
    $region25: #{tpu_custom_call.1} parent=1 // pred_fallthru
      _
    %v69 = vld [vmem:[%s3] sm:$0xf]
    %v70 = vld [vmem:[%s3 + $0x4] sm:$0xf]
    %v71 = vld [vmem:[%s3 + $0x8] sm:$0xf]
    %v72 = vld [vmem:[%s3 + $0xc] sm:$0xf]
    %v73 = vld [vmem:[%s3 + $0x10] sm:$0xf]
    %v74 = vld [vmem:[%s3 + $0x14] sm:$0xf]
    %v75 = vld [vmem:[%s3 + $0x18] sm:$0xf]
    %v76 = vld [vmem:[%s3 + $0x1c] sm:$0xf]
    %v77 = vld [vmem:[%s4] sm:$0x1]
    %v78 = vld [vmem:[#allocation2] sm:$0x1]
    %v80 = vperm.slane %v77, 0
    %v90 = vunpack.c.l.b16 %v69
    %v91 = vunpack.c.l.b16 %v70
    %v92 = vunpack.c.l.b16 %v71
    %v93 = vunpack.c.l.b16 %v72
    %v94 = vunpack.c.l.b16 %v73
    %v95 = vunpack.c.l.b16 %v74
    %v96 = vunpack.c.l.b16 %v75
    %v97 = vunpack.c.l.b16 %v76
    %v98 = vpack.c.b16 %v91, %v90
    %v99 = vpack.c.b16 %v93, %v92
    %v100 = vpack.c.b16 %v95, %v94
    %v101 = vpack.c.b16 %v97, %v96
    %vm106 = vcmask 523264
    %v108 = vsel %vm106, %v78, 0
    %110 = vmatpush.bf16.msra.mxu0 0
    %111 = vmatpush.bf16.msra.mxu0 0
    %112 = vmatpush.bf16.msra.mxu0 0
    %113 = vmatpush.bf16.msra.mxu0 0
    %114 = vmatpush.bf16.msra.mxu0 %v101
    %115 = vmatpush.bf16.msra.mxu0 %v100
    %116 = vmatpush.bf16.msra.mxu0 %v99
    %117 = vmatpush.bf16.msra.mxu0 %v98
    %118 = vmatmul.bf16.gmra.mxu0 %v108
    %v119 = vpop.f32.mrf.mxu0
    %v120 = vadd.f32 %v80, %v119
    %v121 = vpop.f32.mrf.mxu0
    %122 = vdwg.mxu0
    %vm123 = vcmask 386048
    %124 = vst.msk [vmem:[#allocation3] sm:$0x3] %vm123, %v120
    // Predicated region
    $region26: #{tpu_custom_call.1} parent=1 // pred_check
      _
    $region27: #{tpu_custom_call.1} parent=1 // pred_check_branch
      %126 = sbr.rel (0) target = $region29
    $region28: #{tpu_custom_call.1} parent=1 // pred_region
      %128 = vsyncadd [#allocation4], 0
      %s130 = sshll.u32 [#allocation3], 4
      %s131 = int_to_ptr.vmem [resolvable:$true] %s130
      %s132 = sshll.u32 %s5, 4
      %s133 = int_to_ptr.hbm [resolvable:$true] %s132
      %135 = dma.vmem_to_hbm [thread:$0]  %s131, 32, %s133, [#allocation4]
    $region29: #{tpu_custom_call.1} parent=1 // pred_fallthru
      _
    // Predicated region
    $region30: #{tpu_custom_call.1} parent=1 // pred_check
      _
    $region31: #{tpu_custom_call.1} parent=1 // pred_check_branch
      %137 = sbr.rel (0) target = $region33
    $region32: #{tpu_custom_call.1} parent=1 // pred_region
      %139 = dma.done [#allocation4], 32
    $region33: #{tpu_custom_call.1} parent=1 // pred_fallthru
      _
    %140 = vsyncpa [#allocation4], 1

// kernel: tpu_custom_call.1
$region0: #{tpu_custom_call.1}
  #allocation0 [shape = 'u32[]', space=smem, size = 0x4, offset = 0x4, fixed_abs, tag = 'smem constant byte address 0x4 - core index']
  #allocation1 [shape = 'u32[72,128]{1,0:T(1,128)}', space=vmem, size = 0x9000, scoped, tag = 'internal scratch']
  #allocation2 [shape = 'bf16[2,64]{1,0:T(2,128)(2,1)}', space=vmem, size = 0x200, scoped, tag = 'scratch operand']
  %s0 = inlined_call_operand.vmem [shape: f32[2,32], index: 0, kind: input, shape index: {}]
  %s1 = inlined_call_operand.vmem [shape: bf16[32,64], index: 1, kind: input, shape index: {}]
  %s2 = inlined_call_operand.vmem [shape: f32[1,64], index: 2, kind: input, shape index: {}]
  %s3 = inlined_call_operand.vmem [shape: bf16[64,48], index: 3, kind: input, shape index: {}]
  %s4 = inlined_call_operand.vmem [shape: f32[1,48], index: 4, kind: input, shape index: {}]
  %s5 = inlined_call_operand.hbm [shape: f32[2,48], index: 5, kind: output, shape index: {}]
  %s6 = sld [smem:[#allocation0]]
  $region34: #{tpu_custom_call.1} parent=0
    _
  %s8 = ssub.s32 1, %s6
  %s9 = scalar_select 0, %s8, %s6
  $region1: #{tpu_custom_call.1} parent=0
    #allocation3 [shape = 'u8[1024]{0}', space=vmem, size = 0x400, scoped, tag = 'output window, operand 0, single buffered']
    #allocation4 [shape = 's32[1]{0}', space=sflag, size = 0x4, scoped, tag = 'scoped memory for tpu_custom_call.1']
    %10 = vsyncpa [#allocation4], 0
    // Predicated region
    $region2: #{tpu_custom_call.1} parent=1 // pred_check
      _
    $region3: #{tpu_custom_call.1} parent=1 // pred_check_branch
      %12 = sbr.rel (0) target = $region5
    $region4: #{tpu_custom_call.1} parent=1 // pred_region
      _
    $region5: #{tpu_custom_call.1} parent=1 // pred_fallthru
      _
    // Predicated region
    $region6: #{tpu_custom_call.1} parent=1 // pred_check
      _
    $region7: #{tpu_custom_call.1} parent=1 // pred_check_branch
      %14 = sbr.rel (0) target = $region9
    $region8: #{tpu_custom_call.1} parent=1 // pred_region
      _
    $region9: #{tpu_custom_call.1} parent=1 // pred_fallthru
      _
    // Predicated region
    $region10: #{tpu_custom_call.1} parent=1 // pred_check
      _
    $region11: #{tpu_custom_call.1} parent=1 // pred_check_branch
      %16 = sbr.rel (0) target = $region13
    $region12: #{tpu_custom_call.1} parent=1 // pred_region
      _
    $region13: #{tpu_custom_call.1} parent=1 // pred_fallthru
      _
    // Predicated region
    $region14: #{tpu_custom_call.1} parent=1 // pred_check
      _
    $region15: #{tpu_custom_call.1} parent=1 // pred_check_branch
      %18 = sbr.rel (0) target = $region17
    $region16: #{tpu_custom_call.1} parent=1 // pred_region
      _
    $region17: #{tpu_custom_call.1} parent=1 // pred_fallthru
      _
    // Predicated region
    $region18: #{tpu_custom_call.1} parent=1 // pred_check
      _
    $region19: #{tpu_custom_call.1} parent=1 // pred_check_branch
      %20 = sbr.rel (0) target = $region21
    $region20: #{tpu_custom_call.1} parent=1 // pred_region
      _
    $region21: #{tpu_custom_call.1} parent=1 // pred_fallthru
      _
    %p22 = scmp.eq.s32.totalorder 0, 0
    // Predicated region
    $region22: #{tpu_custom_call.1} parent=1 // pred_check
      %p23 = pneg %p22
    $region23: #{tpu_custom_call.1} parent=1 // pred_check_branch
      %25 = sbr.rel (%p23) target = $region25
    $region24: #{tpu_custom_call.1} parent=1 // pred_region
      %v26 = vld [vmem:[%s0] sm:$0x3]
      %v27 = vpack.c.bf16 %v26, %v26
      %v28 = vld [vmem:[%s1] sm:$0xf]
      %v29 = vld [vmem:[%s1 + $0x4] sm:$0xf]
      %v30 = vld [vmem:[%s1 + $0x8] sm:$0xf]
      %v31 = vld [vmem:[%s1 + $0xc] sm:$0xf]
      %v32 = vld [vmem:[%s2] sm:$0x1]
      %v34 = vperm.slane %v32, 0
      %v40 = vunpack.c.l.b16 %v28
      %v41 = vunpack.c.l.b16 %v29
      %v42 = vunpack.c.l.b16 %v30
      %v43 = vunpack.c.l.b16 %v31
      %v44 = vpack.c.b16 %v41, %v40
      %v45 = vpack.c.b16 %v43, %v42
      %vm48 = vcmask 261120
      %v50 = vsel %vm48, %v27, 0
      %52 = vmatpush.bf16.msra.mxu0 0
      %53 = vmatpush.bf16.msra.mxu0 0
      %54 = vmatpush.bf16.msra.mxu0 0
      %55 = vmatpush.bf16.msra.mxu0 0
      %56 = vmatpush.bf16.msra.mxu0 0
      %57 = vmatpush.bf16.msra.mxu0 0
      %58 = vmatpush.bf16.msra.mxu0 %v45
      %59 = vmatpush.bf16.msra.mxu0 %v44
      %60 = vmatmul.bf16.gmra.mxu0 %v50
      %v61 = vpop.f32.mrf.mxu0
      %v62 = vadd.f32 %v34, %v61
      %v63 = vpop.f32.mrf.mxu0
      %64 = vdwg.mxu0
      %v65 = vmax.f32 %v62, 0.0
      %v66 = vpack.c.bf16 %v65, %v65
      %vm67 = vcmask 516096
      %68 = vst.msk [vmem:[#allocation2] sm:$0x1] %vm67, %v66
    $region25: #{tpu_custom_call.1} parent=1 // pred_fallthru
      _
    %v69 = vld [vmem:[%s3] sm:$0xf]
    %v70 = vld [vmem:[%s3 + $0x4] sm:$0xf]
    %v71 = vld [vmem:[%s3 + $0x8] sm:$0xf]
    %v72 = vld [vmem:[%s3 + $0xc] sm:$0xf]
    %v73 = vld [vmem:[%s3 + $0x10] sm:$0xf]
    %v74 = vld [vmem:[%s3 + $0x14] sm:$0xf]
    %v75 = vld [vmem:[%s3 + $0x18] sm:$0xf]
    %v76 = vld [vmem:[%s3 + $0x1c] sm:$0xf]
    %v77 = vld [vmem:[%s4] sm:$0x1]
    %v78 = vld [vmem:[#allocation2] sm:$0x1]
    %v80 = vperm.slane %v77, 0
    %v90 = vunpack.c.l.b16 %v69
    %v91 = vunpack.c.l.b16 %v70
    %v92 = vunpack.c.l.b16 %v71
    %v93 = vunpack.c.l.b16 %v72
    %v94 = vunpack.c.l.b16 %v73
    %v95 = vunpack.c.l.b16 %v74
    %v96 = vunpack.c.l.b16 %v75
    %v97 = vunpack.c.l.b16 %v76
    %v98 = vpack.c.b16 %v91, %v90
    %v99 = vpack.c.b16 %v93, %v92
    %v100 = vpack.c.b16 %v95, %v94
    %v101 = vpack.c.b16 %v97, %v96
    %vm106 = vcmask 523264
    %v108 = vsel %vm106, %v78, 0
    %110 = vmatpush.bf16.msra.mxu0 0
    %111 = vmatpush.bf16.msra.mxu0 0
    %112 = vmatpush.bf16.msra.mxu0 0
    %113 = vmatpush.bf16.msra.mxu0 0
    %114 = vmatpush.bf16.msra.mxu0 %v101
    %115 = vmatpush.bf16.msra.mxu0 %v100
    %116 = vmatpush.bf16.msra.mxu0 %v99
    %117 = vmatpush.bf16.msra.mxu0 %v98
    %118 = vmatmul.bf16.gmra.mxu0 %v108
    %v119 = vpop.f32.mrf.mxu0
    %v120 = vadd.f32 %v80, %v119
    %v121 = vpop.f32.mrf.mxu0
    %122 = vdwg.mxu0
    %vm123 = vcmask 386048
    %124 = vst.msk [vmem:[#allocation3] sm:$0x3] %vm123, %v120
    // Predicated region
    $region26: #{tpu_custom_call.1} parent=1 // pred_check
      _
    $region27: #{tpu_custom_call.1} parent=1 // pred_check_branch
      %126 = sbr.rel (0) target = $region29
    $region28: #{tpu_custom_call.1} parent=1 // pred_region
      %128 = vsyncadd [#allocation4], 0
      %s130 = sshll.u32 [#allocation3], 4
      %s131 = int_to_ptr.vmem [resolvable:$true] %s130
      %s132 = sshll.u32 %s5, 4
      %s133 = int_to_ptr.hbm [resolvable:$true] %s132
      %135 = dma.vmem_to_hbm [thread:$0]  %s131, 32, %s133, [#allocation4]
    $region29: #{tpu_custom_call.1} parent=1 // pred_fallthru
      _
    // Predicated region
    $region30: #{tpu_custom_call.1} parent=1 // pred_check
      _
    $region31: #{tpu_custom_call.1} parent=1 // pred_check_branch
      %137 = sbr.rel (0) target = $region33
    $region32: #{tpu_custom_call.1} parent=1 // pred_region
      %139 = dma.done [#allocation4], 32
    $region33: #{tpu_custom_call.1} parent=1 // pred_fallthru
      _
    %140 = vsyncpa [#allocation4], 1

</llo_original>
